<compile_context>
chip_gen: v6e
topology: v6e:2x2x1
jax: 0.10.0
libtpu: 0.0.40
codegen_flags: <defaults>
</compile_context>

<pallas_src>
import jax
import jax.numpy as jnp
from jax.experimental import pallas as pl
from jax.experimental.pallas import tpu as pltpu


def _round_up(x, m):
    return (x + m - 1) // m * m


# ----------------------------------------------------------------------------
# Kernel: one [tm, tn] tile of the reconstruction per grid step.
#   a_ref : [tm, k]  (row tile of A = x0 @ W0p)
#   bt_ref: [k, tn]  (column tile of Bt = (x1 @ W1p)^T)
# ----------------------------------------------------------------------------
def _imc_kernel(a_ref, bt_ref, o_ref):
    o_ref[...] = jnp.dot(
        a_ref[...], bt_ref[...], preferred_element_type=jnp.float32
    ).astype(o_ref.dtype)


# ----------------------------------------------------------------------------
# Wrapper: factor precompute + tiled pallas_call over the output.
# ----------------------------------------------------------------------------
def imc_forward(x0, x1, w0, w1, *, tm=512, tn=512,
                compute_dtype=jnp.bfloat16, out_dtype=jnp.float32):
    """IMC.forward: (x0 @ W0p) @ (x1 @ W1p)^T, tiled over the output."""
    n0, in1 = x0.shape
    n1, in2 = x1.shape
    k = w0.shape[1]
    assert w0.shape[0] == in1 and w1.shape[0] == in2 and w1.shape[1] == k

    cd = compute_dtype

    # Factor matmuls once (each output row/col uses them n_tiles times in the
    # old fused version).  bf16 operands, f32 accumulation, then stored at the
    # kernel's compute precision.  Bt is produced pre-transposed so the kernel
    # contraction is a plain [tm,k] @ [k,tn].
    a = jnp.dot(x0.astype(cd), w0.astype(cd),
                preferred_element_type=jnp.float32).astype(cd)          # [n0, k]
    bt = jnp.dot(x1.astype(cd), w1.astype(cd),
                 preferred_element_type=jnp.float32).astype(cd).T       # [k, n1]

    # Tile sizes: tm multiple of 8 (sublane), tn multiple of 128 (lane-dense
    # stores).  Shrink to the problem size for small inputs; the cdiv grid
    # handles the ragged last block (Pallas masks the edge stores).
    tm = _round_up(max(8, min(tm, _round_up(n0, 8))), 8)
    tn = _round_up(max(128, min(tn, _round_up(n1, 128))), 128)
    grid = (pl.cdiv(n0, tm), pl.cdiv(n1, tn))

    # VMEM budget: double-buffered output tile + tiny A/Bt tiles, with
    # headroom; capped at 64 MiB so big tm/tn sweeps stay legal on v7x.
    out_isz = jnp.dtype(out_dtype).itemsize
    in_isz = jnp.dtype(cd).itemsize
    vmem_bytes = 2 * (tm * tn * out_isz + (tm * k + k * tn) * in_isz) + (8 << 20)
    vmem_limit = int(min(max(vmem_bytes, 32 << 20), 64 << 20))

    rec = pl.pallas_call(
        _imc_kernel,
        out_shape=jax.ShapeDtypeStruct((n0, n1), out_dtype),
        grid_spec=pltpu.PrefetchScalarGridSpec(
            num_scalar_prefetch=0,
            grid=grid,
            in_specs=[
                pl.BlockSpec((tm, k), lambda i, j: (i, 0)),   # A row tile
                pl.BlockSpec((k, tn), lambda i, j: (0, j)),   # Bt col tile
            ],
            out_specs=pl.BlockSpec((tm, tn), lambda i, j: (i, j)),
        ),
        compiler_params=pltpu.CompilerParams(
            # Independent output tiles on both axes -> megacore sharding.
            dimension_semantics=("parallel", "parallel"),
            vmem_limit_bytes=vmem_limit,
        ),
    )(a, bt)

    return rec


# ----------------------------------------------------------------------------
# Deterministic demo / self-check.
# ----------------------------------------------------------------------------
if __name__ == "__main__":
    key = jax.random.PRNGKey(0)
    k0, k1, k2, k3 = jax.random.split(key, 4)

    # Small shapes consistent with IMC(in1_features, in2_features, dim_pred).
    in1_features, in2_features, dim_pred = 32, 48, 16
    n0, n1 = 300, 200                       # non-tile-multiple rows on purpose

    x0 = jax.random.normal(k0, (n0, in1_features), jnp.float32)
    x1 = jax.random.normal(k1, (n1, in2_features), jnp.float32)
    W0p = jax.random.normal(k2, (in1_features, dim_pred), jnp.float32)  # torch.randn
    W1p = jax.random.normal(k3, (in2_features, dim_pred), jnp.float32)  # torch.randn

    # Exact f32 reference (plain XLA, matches the PyTorch module).
    ref = (x0 @ W0p) @ (x1 @ W1p).T

    # 1) Default (bf16 operands, f32 accumulate) path.
    fwd = jax.jit(imc_forward)
    rec = fwd(x0, x1, W0p, W1p)
    jax.block_until_ready(rec)

    assert rec.shape == (n0, n1)
    assert bool(jnp.all(jnp.isfinite(rec)))
    rel_err = float(jnp.linalg.norm(rec - ref) / jnp.linalg.norm(ref))
    assert rel_err < 2e-2, rel_err          # bf16-operand rounding only

    # 2) Full-f32 path: exercises the same kernel and must match tightly.
    fwd_f32 = jax.jit(
        lambda a, b, c, d: imc_forward(a, b, c, d, compute_dtype=jnp.float32))
    rec_f32 = fwd_f32(x0, x1, W0p, W1p)
    jax.block_until_ready(rec_f32)
    assert bool(jnp.allclose(rec_f32, ref, rtol=1e-3, atol=1e-3)), float(
        jnp.max(jnp.abs(rec_f32 - ref)))

    print("KERNEL_OK")
</pallas_src>

<mosaic_0001>
module attributes {stable_mosaic.version = 11 : i64} {
  func.func @_imc_kernel(%arg0: i32, %arg1: i32, %arg2: memref<304x16xbf16, #tpu.memory_space<vmem>>, %arg3: memref<16x256xbf16, #tpu.memory_space<vmem>>, %arg4: memref<304x256xf32, #tpu.memory_space<vmem>>) attributes {dimension_semantics = [#tpu.dimension_semantics<parallel>, #tpu.dimension_semantics<parallel>], iteration_bounds = array<i64: 1, 1>, scalar_prefetch = 0 : i64, scratch_operands = 0 : i64, tpu.core_type = #tpu.core_type<tc>, window_params = [{transform_indices = @transform_0, window_bounds = array<i64: 304, 16>}, {transform_indices = @transform_1, window_bounds = array<i64: 16, 256>}, {transform_indices = @transform_2, window_bounds = array<i64: 304, 256>}]} {
    %c0 = arith.constant 0 : index
    %c0_0 = arith.constant 0 : index
    %0 = vector.load %arg2[%c0, %c0_0] : memref<304x16xbf16, #tpu.memory_space<vmem>>, vector<304x16xbf16>
    %c0_1 = arith.constant 0 : index
    %c0_2 = arith.constant 0 : index
    %1 = vector.load %arg3[%c0_1, %c0_2] : memref<16x256xbf16, #tpu.memory_space<vmem>>, vector<16x256xbf16>
    %cst = arith.constant dense<0.000000e+00> : vector<304x256xf32>
    %2 = tpu.matmul %0, %1, %cst {dimension_numbers = #tpu.dot_dimension_numbers<[1], [0], [0], [1], [0, 0, 1, 1], [], []>} : vector<304x16xbf16>, vector<16x256xbf16>, vector<304x256xf32> -> vector<304x256xf32>
    %c0_3 = arith.constant 0 : index
    %c0_4 = arith.constant 0 : index
    %3 = vector.load %arg4[%c0_3, %c0_4] : memref<304x256xf32, #tpu.memory_space<vmem>>, vector<304x256xf32>
    tpu.vector_store %arg4[%c0_3, %c0_4], %2 {strides = array<i32>} : memref<304x256xf32, #tpu.memory_space<vmem>>, vector<304x256xf32>,
    return
  }
  func.func @transform_0(%arg0: i32, %arg1: i32) -> (i32, i32) {
    %c0_i32 = arith.constant 0 : i32
    %c0_i32_0 = arith.constant 0 : i32
    return %arg0, %c0_i32 : i32, i32
  }
  func.func @transform_1(%arg0: i32, %arg1: i32) -> (i32, i32) {
    %c0_i32 = arith.constant 0 : i32
    %c0_i32_0 = arith.constant 0 : i32
    return %c0_i32, %arg1 : i32, i32
  }
  func.func @transform_2(%arg0: i32, %arg1: i32) -> (i32, i32) {
    %c0_i32 = arith.constant 0 : i32
    return %arg0, %arg1 : i32, i32
  }
}

</mosaic_0001>

<llo_original>
// kernel: imc_forward.1
$region0: #{imc_forward.1}
  #allocation0 [shape = 'u32[]', space=smem, size = 0x4, offset = 0x4, fixed_abs, tag = 'smem constant byte address 0x4 - core index']
  #allocation1 [shape = 'u32[144,128]{1,0:T(1,128)}', space=vmem, size = 0x12000, scoped, tag = 'internal scratch']
  %s0 = inlined_call_operand.vmem [shape: bf16[300,16], index: 0, kind: input, shape index: {}]
  %s1 = inlined_call_operand.vmem [shape: bf16[16,200], index: 1, kind: input, shape index: {}]
  %s2 = inlined_call_operand.vmem [shape: f32[300,200], index: 2, kind: output, shape index: {}]
  %s3 = sld [smem:[#allocation0]]
  $region18: #{imc_forward.1} parent=0
    _
  %s5 = ssub.s32 1, %s3
  %s6 = scalar_select 0, %s5, %s3
  // Predicated region
  $region2: #{imc_forward.1} parent=0 // pred_check
    _
  $region3: #{imc_forward.1} parent=0 // pred_check_branch
    %8 = sbr.rel (0) target = $region5
  $region4: #{imc_forward.1} parent=0 // pred_region
    _
  $region5: #{imc_forward.1} parent=0 // pred_fallthru
    _
  // Predicated region
  $region6: #{imc_forward.1} parent=0 // pred_check
    _
  $region7: #{imc_forward.1} parent=0 // pred_check_branch
    %10 = sbr.rel (0) target = $region9
  $region8: #{imc_forward.1} parent=0 // pred_region
    _
  $region9: #{imc_forward.1} parent=0 // pred_fallthru
    _
  %v12 = vld [vmem:[%s0] sm:$0xf]
  %v13 = vld [vmem:[%s0 + $0x4] sm:$0xf]
  %v14 = vld [vmem:[%s0 + $0x8] sm:$0xf]
  %v15 = vld [vmem:[%s0 + $0xc] sm:$0xf]
  %v16 = vld [vmem:[%s0 + $0x10] sm:$0xf]
  %v17 = vld [vmem:[%s0 + $0x14] sm:$0xf]
  %v18 = vld [vmem:[%s0 + $0x18] sm:$0xf]
  %v19 = vld [vmem:[%s0 + $0x1c] sm:$0xf]
  %v20 = vld [vmem:[%s0 + $0x20] sm:$0xf]
  %v21 = vld [vmem:[%s0 + $0x24] sm:$0xf]
  %v22 = vld [vmem:[%s0 + $0x28] sm:$0xf]
  %v23 = vld [vmem:[%s0 + $0x2c] sm:$0xf]
  %v24 = vld [vmem:[%s0 + $0x30] sm:$0xf]
  %v25 = vld [vmem:[%s0 + $0x34] sm:$0xf]
  %v26 = vld [vmem:[%s0 + $0x38] sm:$0xf]
  %v27 = vld [vmem:[%s0 + $0x3c] sm:$0xf]
  %v28 = vld [vmem:[%s0 + $0x40] sm:$0xf]
  %v29 = vld [vmem:[%s0 + $0x44] sm:$0xf]
  %v30 = vld [vmem:[%s0 + $0x48] sm:$0xf]
  %v31 = vld [vmem:[%s0 + $0x4c] sm:$0xf]
  %v32 = vld [vmem:[%s0 + $0x50] sm:$0xf]
  %v33 = vld [vmem:[%s0 + $0x54] sm:$0xf]
  %v34 = vld [vmem:[%s0 + $0x58] sm:$0xf]
  %v35 = vld [vmem:[%s0 + $0x5c] sm:$0xf]
  %v36 = vld [vmem:[%s0 + $0x60] sm:$0xf]
  %v37 = vld [vmem:[%s0 + $0x64] sm:$0xf]
  %v38 = vld [vmem:[%s0 + $0x68] sm:$0xf]
  %v39 = vld [vmem:[%s0 + $0x6c] sm:$0xf]
  %v40 = vld [vmem:[%s0 + $0x70] sm:$0xf]
  %v41 = vld [vmem:[%s0 + $0x74] sm:$0xf]
  %v42 = vld [vmem:[%s0 + $0x78] sm:$0xf]
  %v43 = vld [vmem:[%s0 + $0x7c] sm:$0xf]
  %v44 = vld [vmem:[%s0 + $0x80] sm:$0xf]
  %v45 = vld [vmem:[%s0 + $0x84] sm:$0xf]
  %v46 = vld [vmem:[%s0 + $0x88] sm:$0xf]
  %v47 = vld [vmem:[%s0 + $0x8c] sm:$0xf]
  %v48 = vld [vmem:[%s0 + $0x90] sm:$0xf]
  %v49 = vld [vmem:[%s0 + $0x94] sm:$0xf]
  %v50 = vld [vmem:[%s1] sm:$0xff]
  %v51 = vld [vmem:[%s1 + $0x8] sm:$0xff]
  %v90 = vunpack.c.l.b16 %v12
  %v91 = vunpack.c.l.b16 %v13
  %v92 = vunpack.c.l.b16 %v14
  %v93 = vunpack.c.l.b16 %v15
  %v94 = vunpack.c.l.b16 %v16
  %v95 = vunpack.c.l.b16 %v17
  %v96 = vunpack.c.l.b16 %v18
  %v97 = vunpack.c.l.b16 %v19
  %v98 = vunpack.c.l.b16 %v20
  %v99 = vunpack.c.l.b16 %v21
  %v100 = vunpack.c.l.b16 %v22
  %v101 = vunpack.c.l.b16 %v23
  %v102 = vunpack.c.l.b16 %v24
  %v103 = vunpack.c.l.b16 %v25
  %v104 = vunpack.c.l.b16 %v26
  %v105 = vunpack.c.l.b16 %v27
  %v106 = vunpack.c.l.b16 %v28
  %v107 = vunpack.c.l.b16 %v29
  %v108 = vunpack.c.l.b16 %v30
  %v109 = vunpack.c.l.b16 %v31
  %v110 = vunpack.c.l.b16 %v32
  %v111 = vunpack.c.l.b16 %v33
  %v112 = vunpack.c.l.b16 %v34
  %v113 = vunpack.c.l.b16 %v35
  %v114 = vunpack.c.l.b16 %v36
  %v115 = vunpack.c.l.b16 %v37
  %v116 = vunpack.c.l.b16 %v38
  %v117 = vunpack.c.l.b16 %v39
  %v118 = vunpack.c.l.b16 %v40
  %v119 = vunpack.c.l.b16 %v41
  %v120 = vunpack.c.l.b16 %v42
  %v121 = vunpack.c.l.b16 %v43
  %v122 = vunpack.c.l.b16 %v44
  %v123 = vunpack.c.l.b16 %v45
  %v124 = vunpack.c.l.b16 %v46
  %v125 = vunpack.c.l.b16 %v47
  %v126 = vunpack.c.l.b16 %v48
  %v127 = vunpack.c.l.b16 %v49
  %v128 = vpack.c.b16 %v91, %v90
  %v129 = vpack.c.b16 %v93, %v92
  %v130 = vpack.c.b16 %v95, %v94
  %v131 = vpack.c.b16 %v97, %v96
  %v132 = vpack.c.b16 %v99, %v98
  %v133 = vpack.c.b16 %v101, %v100
  %v134 = vpack.c.b16 %v103, %v102
  %v135 = vpack.c.b16 %v105, %v104
  %v136 = vpack.c.b16 %v107, %v106
  %v137 = vpack.c.b16 %v109, %v108
  %v138 = vpack.c.b16 %v111, %v110
  %v139 = vpack.c.b16 %v113, %v112
  %v140 = vpack.c.b16 %v115, %v114
  %v141 = vpack.c.b16 %v117, %v116
  %v142 = vpack.c.b16 %v119, %v118
  %v143 = vpack.c.b16 %v121, %v120
  %v144 = vpack.c.b16 %v123, %v122
  %v145 = vpack.c.b16 %v125, %v124
  %v146 = vpack.c.b16 %v127, %v126
  %v149 = vunpack.c.l.b16 %v50
  %v150 = vunpack.c.h.b16 %v50
  %v151 = vunpack.c.l.b16 %v51
  %v152 = vunpack.c.h.b16 %v51
  %v153 = vpack.c.b16 %v151, %v149
  %v154 = vpack.c.b16 %v152, %v150
  %vm157 = vcmask 130048
  %v159 = vsel %vm157, %v128, 0
  %v162 = vsel %vm157, %v129, 0
  %v165 = vsel %vm157, %v130, 0
  %v168 = vsel %vm157, %v131, 0
  %v171 = vsel %vm157, %v132, 0
  %v174 = vsel %vm157, %v133, 0
  %v177 = vsel %vm157, %v134, 0
  %v180 = vsel %vm157, %v135, 0
  %v183 = vsel %vm157, %v136, 0
  %v186 = vsel %vm157, %v137, 0
  %v189 = vsel %vm157, %v138, 0
  %v192 = vsel %vm157, %v139, 0
  %v195 = vsel %vm157, %v140, 0
  %v198 = vsel %vm157, %v141, 0
  %v201 = vsel %vm157, %v142, 0
  %v204 = vsel %vm157, %v143, 0
  %v207 = vsel %vm157, %v144, 0
  %v210 = vsel %vm157, %v145, 0
  %v213 = vsel %vm157, %v146, 0
  %215 = vmatprep.subr.bf16.mxu0 0
  %216 = vmatpush1.bf16.msra.mxu0 0
  %217 = vmatprep.subr.bf16.mxu0 0
  %218 = vmatpush1.bf16.msra.mxu0 0
  %219 = vmatprep.subr.bf16.mxu0 0
  %220 = vmatpush1.bf16.msra.mxu0 0
  %221 = vmatprep.subr.bf16.mxu0 0
  %222 = vmatpush1.bf16.msra.mxu0 0
  %223 = vmatprep.subr.bf16.mxu0 0
  %224 = vmatpush1.bf16.msra.mxu0 0
  %225 = vmatprep.subr.bf16.mxu0 0
  %226 = vmatpush1.bf16.msra.mxu0 0
  %227 = vmatprep.subr.bf16.mxu0 0
  %228 = vmatpush1.bf16.msra.mxu0 0
  %229 = vmatprep.subr.bf16.mxu0 %v154
  %230 = vmatpush1.bf16.msra.mxu0 %v153
  %231 = vmatprep.subr.bf16.mxu0 0
  %232 = vmatpush2.bf16.msra.mxu0 0
  %233 = vmatprep.subr.bf16.mxu0 0
  %234 = vmatpush2.bf16.msra.mxu0 0
  %235 = vmatprep.subr.bf16.mxu0 0
  %236 = vmatpush2.bf16.msra.mxu0 0
  %237 = vmatprep.subr.bf16.mxu0 0
  %238 = vmatpush2.bf16.msra.mxu0 0
  %239 = vmatprep.subr.bf16.mxu0 0
  %240 = vmatpush2.bf16.msra.mxu0 0
  %241 = vmatprep.subr.bf16.mxu0 0
  %242 = vmatpush2.bf16.msra.mxu0 0
  %243 = vmatprep.subr.bf16.mxu0 0
  %244 = vmatpush2.bf16.msra.mxu0 0
  %245 = vmatprep.subr.bf16.mxu0 0
  %246 = vmatpush2.bf16.msra.mxu0 0
  %247 = vmatprep.mubr.bf16.mxu0 0
  %248 = vmatmul.mubr.bf16.gmra.mxu0 %v159
  %v249 = vpop.f32.mrf.mxu0
  %v250 = vadd.f32 0.0, %v249
  %v251 = vpop.f32.mrf.mxu0
  %v252 = vadd.f32 0.0, %v251
  %v253 = vpop.f32.mrf.mxu0
  %v254 = vadd.f32 0.0, %v253
  %v255 = vpop.f32.mrf.mxu0
  %v256 = vadd.f32 0.0, %v255
  %257 = vmatprep.mubr.bf16.mxu0 0
  %258 = vmatmul.mubr.bf16.gmra.mxu0 %v162
  %v259 = vpop.f32.mrf.mxu0
  %v260 = vadd.f32 0.0, %v259
  %v261 = vpop.f32.mrf.mxu0
  %v262 = vadd.f32 0.0, %v261
  %v263 = vpop.f32.mrf.mxu0
  %v264 = vadd.f32 0.0, %v263
  %v265 = vpop.f32.mrf.mxu0
  %v266 = vadd.f32 0.0, %v265
  %267 = vmatprep.mubr.bf16.mxu0 0
  %268 = vmatmul.mubr.bf16.gmra.mxu0 %v165
  %v269 = vpop.f32.mrf.mxu0
  %v270 = vadd.f32 0.0, %v269
  %v271 = vpop.f32.mrf.mxu0
  %v272 = vadd.f32 0.0, %v271
  %v273 = vpop.f32.mrf.mxu0
  %v274 = vadd.f32 0.0, %v273
  %v275 = vpop.f32.mrf.mxu0
  %v276 = vadd.f32 0.0, %v275
  %277 = vmatprep.mubr.bf16.mxu0 0
  %278 = vmatmul.mubr.bf16.gmra.mxu0 %v168
  %v279 = vpop.f32.mrf.mxu0
  %v280 = vadd.f32 0.0, %v279
  %v281 = vpop.f32.mrf.mxu0
  %v282 = vadd.f32 0.0, %v281
  %v283 = vpop.f32.mrf.mxu0
  %v284 = vadd.f32 0.0, %v283
  %v285 = vpop.f32.mrf.mxu0
  %v286 = vadd.f32 0.0, %v285
  %287 = vmatprep.mubr.bf16.mxu0 0
  %288 = vmatmul.mubr.bf16.gmra.mxu0 %v171
  %v289 = vpop.f32.mrf.mxu0
  %v290 = vadd.f32 0.0, %v289
  %v291 = vpop.f32.mrf.mxu0
  %v292 = vadd.f32 0.0, %v291
  %v293 = vpop.f32.mrf.mxu0
  %v294 = vadd.f32 0.0, %v293
  %v295 = vpop.f32.mrf.mxu0
  %v296 = vadd.f32 0.0, %v295
  %297 = vmatprep.mubr.bf16.mxu0 0
  %298 = vmatmul.mubr.bf16.gmra.mxu0 %v174
  %v299 = vpop.f32.mrf.mxu0
  %v300 = vadd.f32 0.0, %v299
  %v301 = vpop.f32.mrf.mxu0
  %v302 = vadd.f32 0.0, %v301
  %v303 = vpop.f32.mrf.mxu0
  %v304 = vadd.f32 0.0, %v303
  %v305 = vpop.f32.mrf.mxu0
  %v306 = vadd.f32 0.0, %v305
  %307 = vmatprep.mubr.bf16.mxu0 0
  %308 = vmatmul.mubr.bf16.gmra.mxu0 %v177
  %v309 = vpop.f32.mrf.mxu0
  %v310 = vadd.f32 0.0, %v309
  %v311 = vpop.f32.mrf.mxu0
  %v312 = vadd.f32 0.0, %v311
  %v313 = vpop.f32.mrf.mxu0
  %v314 = vadd.f32 0.0, %v313
  %v315 = vpop.f32.mrf.mxu0
  %v316 = vadd.f32 0.0, %v315
  %317 = vmatprep.mubr.bf16.mxu0 0
  %318 = vmatmul.mubr.bf16.gmra.mxu0 %v180
  %v319 = vpop.f32.mrf.mxu0
  %v320 = vadd.f32 0.0, %v319
  %v321 = vpop.f32.mrf.mxu0
  %v322 = vadd.f32 0.0, %v321
  %v323 = vpop.f32.mrf.mxu0
  %v324 = vadd.f32 0.0, %v323
  %v325 = vpop.f32.mrf.mxu0
  %v326 = vadd.f32 0.0, %v325
  %327 = vmatprep.mubr.bf16.mxu0 0
  %328 = vmatmul.mubr.bf16.gmra.mxu0 %v183
  %v329 = vpop.f32.mrf.mxu0
  %v330 = vadd.f32 0.0, %v329
  %v331 = vpop.f32.mrf.mxu0
  %v332 = vadd.f32 0.0, %v331
  %v333 = vpop.f32.mrf.mxu0
  %v334 = vadd.f32 0.0, %v333
  %v335 = vpop.f32.mrf.mxu0
  %v336 = vadd.f32 0.0, %v335
  %337 = vmatprep.mubr.bf16.mxu0 0
  %338 = vmatmul.mubr.bf16.gmra.mxu0 %v186
  %v339 = vpop.f32.mrf.mxu0
  %v340 = vadd.f32 0.0, %v339
  %v341 = vpop.f32.mrf.mxu0
  %v342 = vadd.f32 0.0, %v341
  %v343 = vpop.f32.mrf.mxu0
  %v344 = vadd.f32 0.0, %v343
  %v345 = vpop.f32.mrf.mxu0
  %v346 = vadd.f32 0.0, %v345
  %347 = vmatprep.mubr.bf16.mxu0 0
  %348 = vmatmul.mubr.bf16.gmra.mxu0 %v189
  %v349 = vpop.f32.mrf.mxu0
  %v350 = vadd.f32 0.0, %v349
  %v351 = vpop.f32.mrf.mxu0
  %v352 = vadd.f32 0.0, %v351
  %v353 = vpop.f32.mrf.mxu0
  %v354 = vadd.f32 0.0, %v353
  %v355 = vpop.f32.mrf.mxu0
  %v356 = vadd.f32 0.0, %v355
  %357 = vmatprep.mubr.bf16.mxu0 0
  %358 = vmatmul.mubr.bf16.gmra.mxu0 %v192
  %v359 = vpop.f32.mrf.mxu0
  %v360 = vadd.f32 0.0, %v359
  %v361 = vpop.f32.mrf.mxu0
  %v362 = vadd.f32 0.0, %v361
  %v363 = vpop.f32.mrf.mxu0
  %v364 = vadd.f32 0.0, %v363
  %v365 = vpop.f32.mrf.mxu0
  %v366 = vadd.f32 0.0, %v365
  %367 = vmatprep.mubr.bf16.mxu0 0
  %368 = vmatmul.mubr.bf16.gmra.mxu0 %v195
  %v369 = vpop.f32.mrf.mxu0
  %v370 = vadd.f32 0.0, %v369
  %v371 = vpop.f32.mrf.mxu0
  %v372 = vadd.f32 0.0, %v371
  %v373 = vpop.f32.mrf.mxu0
  %v374 = vadd.f32 0.0, %v373
  %v375 = vpop.f32.mrf.mxu0
  %v376 = vadd.f32 0.0, %v375
  %377 = vmatprep.mubr.bf16.mxu0 0
  %378 = vmatmul.mubr.bf16.gmra.mxu0 %v198
  %v379 = vpop.f32.mrf.mxu0
  %v380 = vadd.f32 0.0, %v379
  %v381 = vpop.f32.mrf.mxu0
  %v382 = vadd.f32 0.0, %v381
  %v383 = vpop.f32.mrf.mxu0
  %v384 = vadd.f32 0.0, %v383
  %v385 = vpop.f32.mrf.mxu0
  %v386 = vadd.f32 0.0, %v385
  %387 = vmatprep.mubr.bf16.mxu0 0
  %388 = vmatmul.mubr.bf16.gmra.mxu0 %v201
  %v389 = vpop.f32.mrf.mxu0
  %v390 = vadd.f32 0.0, %v389
  %v391 = vpop.f32.mrf.mxu0
  %v392 = vadd.f32 0.0, %v391
  %v393 = vpop.f32.mrf.mxu0
  %v394 = vadd.f32 0.0, %v393
  %v395 = vpop.f32.mrf.mxu0
  %v396 = vadd.f32 0.0, %v395
  %397 = vmatprep.mubr.bf16.mxu0 0
  %398 = vmatmul.mubr.bf16.gmra.mxu0 %v204
  %v399 = vpop.f32.mrf.mxu0
  %v400 = vadd.f32 0.0, %v399
  %v401 = vpop.f32.mrf.mxu0
  %v402 = vadd.f32 0.0, %v401
  %v403 = vpop.f32.mrf.mxu0
  %v404 = vadd.f32 0.0, %v403
  %v405 = vpop.f32.mrf.mxu0
  %v406 = vadd.f32 0.0, %v405
  %407 = vmatprep.mubr.bf16.mxu0 0
  %408 = vmatmul.mubr.bf16.gmra.mxu0 %v207
  %v409 = vpop.f32.mrf.mxu0
  %v410 = vadd.f32 0.0, %v409
  %v411 = vpop.f32.mrf.mxu0
  %v412 = vadd.f32 0.0, %v411
  %v413 = vpop.f32.mrf.mxu0
  %v414 = vadd.f32 0.0, %v413
  %v415 = vpop.f32.mrf.mxu0
  %v416 = vadd.f32 0.0, %v415
  %417 = vmatprep.mubr.bf16.mxu0 0
  %418 = vmatmul.mubr.bf16.gmra.mxu0 %v210
  %v419 = vpop.f32.mrf.mxu0
  %v420 = vadd.f32 0.0, %v419
  %v421 = vpop.f32.mrf.mxu0
  %v422 = vadd.f32 0.0, %v421
  %v423 = vpop.f32.mrf.mxu0
  %v424 = vadd.f32 0.0, %v423
  %v425 = vpop.f32.mrf.mxu0
  %v426 = vadd.f32 0.0, %v425
  %427 = vmatprep.mubr.bf16.mxu0 0
  %428 = vmatmul.mubr.bf16.gmra.mxu0 %v213
  %v429 = vpop.f32.mrf.mxu0
  %v430 = vadd.f32 0.0, %v429
  %v431 = vpop.f32.mrf.mxu0
  %v432 = vadd.f32 0.0, %v431
  %v433 = vpop.f32.mrf.mxu0
  %v434 = vadd.f32 0.0, %v433
  %v435 = vpop.f32.mrf.mxu0
  %v436 = vadd.f32 0.0, %v435
  %437 = vdwg.mxu0
  %438 = vst [vmem:[%s2] sm:$0xff] %v250
  %439 = vst [vmem:[%s2 + $0x8] sm:$0xff] %v252
  %440 = vst [vmem:[%s2 + $0x10] sm:$0xff] %v254
  %441 = vst [vmem:[%s2 + $0x18] sm:$0xff] %v256
  %442 = vst [vmem:[%s2 + $0x20] sm:$0xff] %v260
  %443 = vst [vmem:[%s2 + $0x28] sm:$0xff] %v262
  %444 = vst [vmem:[%s2 + $0x30] sm:$0xff] %v264
  %445 = vst [vmem:[%s2 + $0x38] sm:$0xff] %v266
  %446 = vst [vmem:[%s2 + $0x40] sm:$0xff] %v270
  %447 = vst [vmem:[%s2 + $0x48] sm:$0xff] %v272
  %448 = vst [vmem:[%s2 + $0x50] sm:$0xff] %v274
  %449 = vst [vmem:[%s2 + $0x58] sm:$0xff] %v276
  %450 = vst [vmem:[%s2 + $0x60] sm:$0xff] %v280
  %451 = vst [vmem:[%s2 + $0x68] sm:$0xff] %v282
  %452 = vst [vmem:[%s2 + $0x70] sm:$0xff] %v284
  %453 = vst [vmem:[%s2 + $0x78] sm:$0xff] %v286
  %454 = vst [vmem:[%s2 + $0x80] sm:$0xff] %v290
  %455 = vst [vmem:[%s2 + $0x88] sm:$0xff] %v292
  %456 = vst [vmem:[%s2 + $0x90] sm:$0xff] %v294
  %457 = vst [vmem:[%s2 + $0x98] sm:$0xff] %v296
  %458 = vst [vmem:[%s2 + $0xa0] sm:$0xff] %v300
  %459 = vst [vmem:[%s2 + $0xa8] sm:$0xff] %v302
  %460 = vst [vmem:[%s2 + $0xb0] sm:$0xff] %v304
  %461 = vst [vmem:[%s2 + $0xb8] sm:$0xff] %v306
  %462 = vst [vmem:[%s2 + $0xc0] sm:$0xff] %v310
  %463 = vst [vmem:[%s2 + $0xc8] sm:$0xff] %v312
  %464 = vst [vmem:[%s2 + $0xd0] sm:$0xff] %v314
  %465 = vst [vmem:[%s2 + $0xd8] sm:$0xff] %v316
  %466 = vst [vmem:[%s2 + $0xe0] sm:$0xff] %v320
  %467 = vst [vmem:[%s2 + $0xe8] sm:$0xff] %v322
  %468 = vst [vmem:[%s2 + $0xf0] sm:$0xff] %v324
  %469 = vst [vmem:[%s2 + $0xf8] sm:$0xff] %v326
  %470 = vst [vmem:[%s2 + $0x100] sm:$0xff] %v330
  %471 = vst [vmem:[%s2 + $0x108] sm:$0xff] %v332
  %472 = vst [vmem:[%s2 + $0x110] sm:$0xff] %v334
  %473 = vst [vmem:[%s2 + $0x118] sm:$0xff] %v336
  %474 = vst [vmem:[%s2 + $0x120] sm:$0xff] %v340
  %475 = vst [vmem:[%s2 + $0x128] sm:$0xff] %v342
  %476 = vst [vmem:[%s2 + $0x130] sm:$0xff] %v344
  %477 = vst [vmem:[%s2 + $0x138] sm:$0xff] %v346
  %478 = vst [vmem:[%s2 + $0x140] sm:$0xff] %v350
  %479 = vst [vmem:[%s2 + $0x148] sm:$0xff] %v352
  %480 = vst [vmem:[%s2 + $0x150] sm:$0xff] %v354
  %481 = vst [vmem:[%s2 + $0x158] sm:$0xff] %v356
  %482 = vst [vmem:[%s2 + $0x160] sm:$0xff] %v360
  %483 = vst [vmem:[%s2 + $0x168] sm:$0xff] %v362
  %484 = vst [vmem:[%s2 + $0x170] sm:$0xff] %v364
  %485 = vst [vmem:[%s2 + $0x178] sm:$0xff] %v366
  %486 = vst [vmem:[%s2 + $0x180] sm:$0xff] %v370
  %487 = vst [vmem:[%s2 + $0x188] sm:$0xff] %v372
  %488 = vst [vmem:[%s2 + $0x190] sm:$0xff] %v374
  %489 = vst [vmem:[%s2 + $0x198] sm:$0xff] %v376
  %490 = vst [vmem:[%s2 + $0x1a0] sm:$0xff] %v380
  %491 = vst [vmem:[%s2 + $0x1a8] sm:$0xff] %v382
  %492 = vst [vmem:[%s2 + $0x1b0] sm:$0xff] %v384
  %493 = vst [vmem:[%s2 + $0x1b8] sm:$0xff] %v386
  %494 = vst [vmem:[%s2 + $0x1c0] sm:$0xff] %v390
  %495 = vst [vmem:[%s2 + $0x1c8] sm:$0xff] %v392
  %496 = vst [vmem:[%s2 + $0x1d0] sm:$0xff] %v394
  %497 = vst [vmem:[%s2 + $0x1d8] sm:$0xff] %v396
  %498 = vst [vmem:[%s2 + $0x1e0] sm:$0xff] %v400
  %499 = vst [vmem:[%s2 + $0x1e8] sm:$0xff] %v402
  %500 = vst [vmem:[%s2 + $0x1f0] sm:$0xff] %v404
  %501 = vst [vmem:[%s2 + $0x1f8] sm:$0xff] %v406
  %502 = vst [vmem:[%s2 + $0x200] sm:$0xff] %v410
  %503 = vst [vmem:[%s2 + $0x208] sm:$0xff] %v412
  %504 = vst [vmem:[%s2 + $0x210] sm:$0xff] %v414
  %505 = vst [vmem:[%s2 + $0x218] sm:$0xff] %v416
  %506 = vst [vmem:[%s2 + $0x220] sm:$0xff] %v420
  %507 = vst [vmem:[%s2 + $0x228] sm:$0xff] %v422
  %508 = vst [vmem:[%s2 + $0x230] sm:$0xff] %v424
  %509 = vst [vmem:[%s2 + $0x238] sm:$0xff] %v426
  %510 = vst [vmem:[%s2 + $0x240] sm:$0xff] %v430
  %511 = vst [vmem:[%s2 + $0x248] sm:$0xff] %v432
  %512 = vst [vmem:[%s2 + $0x250] sm:$0xff] %v434
  %513 = vst [vmem:[%s2 + $0x258] sm:$0xff] %v436
  // Predicated region
  $region10: #{imc_forward.1} parent=0 // pred_check
    _
  $region11: #{imc_forward.1} parent=0 // pred_check_branch
    %515 = sbr.rel (0) target = $region13
  $region12: #{imc_forward.1} parent=0 // pred_region
    _
  $region13: #{imc_forward.1} parent=0 // pred_fallthru
    _
  // Predicated region
  $region14: #{imc_forward.1} parent=0 // pred_check
    _
  $region15: #{imc_forward.1} parent=0 // pred_check_branch
    %517 = sbr.rel (0) target = $region17
  $region16: #{imc_forward.1} parent=0 // pred_region
    _
  $region17: #{imc_forward.1} parent=0 // pred_fallthru
    _

</llo_original>
